<compile_context>
chip_gen: v7x
topology: tpu7x:2x2x1
jax: 0.10.0
libtpu: 0.0.40
codegen_flags: <defaults>
</compile_context>

<pallas_src>
import math

import jax
import jax.numpy as jnp
from jax.experimental import pallas as pl
from jax.experimental.pallas import tpu as pltpu

BN_EPS = 1e-5
LANE = 128
_PREC = jax.lax.Precision.HIGHEST


def _round_up(n, m=LANE):
    return ((n + m - 1) // m) * m


def _critic_kernel(s_ref, a_ref, w1_ref, w2_ref, w3_ref, b3_ref, o_ref):
    # ---- fc1 (bias dropped: exactly cancelled by train-mode BN mean) ----
    h1 = jnp.dot(s_ref[...], w1_ref[...],
                 preferred_element_type=jnp.float32, precision=_PREC)

    # ---- bn1 (training-mode batch stats) + relu ----
    # mean(h) and mean(h*h) are two independent cross-sublane reductions.
    mu1 = jnp.mean(h1, axis=0, keepdims=True)
    ms1 = jnp.mean(h1 * h1, axis=0, keepdims=True)
    var1 = jnp.maximum(ms1 - mu1 * mu1, 0.0)
    xs = jnp.maximum((h1 - mu1) * jax.lax.rsqrt(var1 + BN_EPS), 0.0)

    # ---- concat(xs, actions) as a lane-wise add ----
    # actions live at lanes [H1, H1+A); the padded lanes of xs are exactly zero
    # (zero weights -> h1 == 0 -> bn -> 0 -> relu -> 0), so this add is an
    # exact realization of torch.cat along the feature axis.
    cat = xs + a_ref[...]

    # ---- fc2 (single fused matmul over the packed concat) + bn2 + relu ----
    h2 = jnp.dot(cat, w2_ref[...],
                 preferred_element_type=jnp.float32, precision=_PREC)
    mu2 = jnp.mean(h2, axis=0, keepdims=True)
    ms2 = jnp.mean(h2 * h2, axis=0, keepdims=True)
    var2 = jnp.maximum(ms2 - mu2 * mu2, 0.0)
    x = jnp.maximum((h2 - mu2) * jax.lax.rsqrt(var2 + BN_EPS), 0.0)

    # ---- fc3: single output column -> VPU multiply + lane reduce (no MXU) ---
    o_ref[...] = (jnp.sum(x * w3_ref[...], axis=-1, keepdims=True)
                  + b3_ref[0])


def prepare_critic_params(params, state_size, action_size, hidden1, hidden2):
    """One-time weight padding, hoisted out of the per-call path.

    b1/b2 are intentionally dropped: a constant per-feature bias added before a
    training-mode BatchNorm (gamma=1, beta=0) is cancelled by the mean
    subtraction.  They would only matter if eval()/running-stat mode is added.
    """
    C_P = _round_up(hidden1 + action_size)      # padded fc1-out / concat width
    H2_P = _round_up(hidden2)                   # padded fc2-out width
    f32 = jnp.float32

    w1_p = jnp.zeros((state_size, C_P), f32).at[:, :hidden1].set(params["w1"])
    # combined fc2 weight: rows [0:H1] act on xs, rows [H1:H1+A] on actions.
    w2_p = (jnp.zeros((C_P, H2_P), f32)
            .at[:hidden1, :hidden2].set(params["w2_s"])
            .at[hidden1:hidden1 + action_size, :hidden2].set(params["w2_a"]))
    # fc3 weight as a lane row for the VPU reduction; b3 as an SMEM scalar.
    w3_p = jnp.zeros((1, H2_P), f32).at[:, :hidden2].set(params["w3"][:, 0])
    b3 = params["b3"].astype(f32).reshape(1)
    return {"w1": w1_p, "w2": w2_p, "w3": w3_p, "b3": b3}


def make_critic_forward(prepared, state_size, action_size, hidden1, hidden2):
    """Returns a jitted (states, actions) -> (B, 1) forward closure."""
    w1_p, w2_p, w3_p, b3 = (prepared["w1"], prepared["w2"],
                            prepared["w3"], prepared["b3"])
    C_P, H2_P = w2_p.shape

    vmem = pl.BlockSpec(memory_space=pltpu.MemorySpace.VMEM)
    smem = pl.BlockSpec(memory_space=pltpu.MemorySpace.SMEM)

    @jax.jit
    def forward(states, actions):
        # mirror `if states.dim() == 1: states = states.unsqueeze(0)`
        if states.ndim == 1:
            states = states[None, :]
        if actions.ndim == 1:
            actions = actions[None, :]
        # TODO(synk): B == 1 runs training-mode BN on a single sample (var==0);
        #             PyTorch BatchNorm1d raises in train() for batch size 1.
        B = states.shape[0]

        states = states.astype(jnp.float32)
        # Pack actions into lanes [H1, H1+A) of the concat-width buffer; the
        # only per-call host-side prep.
        actions_p = jnp.zeros((B, C_P), jnp.float32).at[
            :, hidden1:hidden1 + action_size].set(actions)

        cost = pl.CostEstimate(
            flops=2 * B * (state_size * C_P + C_P * H2_P + H2_P),
            transcendentals=C_P + H2_P,
            bytes_accessed=4 * (B * state_size + B * C_P + state_size * C_P
                                + C_P * H2_P + H2_P + 1 + B),
        )
        return pl.pallas_call(
            _critic_kernel,
            out_shape=jax.ShapeDtypeStruct((B, 1), jnp.float32),
            in_specs=[vmem, vmem, vmem, vmem, vmem, smem],
            out_specs=vmem,
            cost_estimate=cost,
        )(states, actions_p, w1_p, w2_p, w3_p, b3)

    return forward


def init_critic_params(key, state_size, action_size, hidden1, hidden2):
    """Deterministic init mirroring the PyTorch module's weight_initialiser().

    hidden_init() uses weight.size()[0] == out_features, so fc1/fc2 weight
    limits are 1/sqrt(hidden1) and 1/sqrt(hidden2).  Biases keep nn.Linear's
    default U(-1/sqrt(in_features), 1/sqrt(in_features)).
    """
    ks = jax.random.split(key, 6)

    def u(k, shape, lim):
        return jax.random.uniform(k, shape, jnp.float32, -lim, lim)

    w1 = u(ks[0], (state_size, hidden1), 1.0 / math.sqrt(hidden1))
    b1 = u(ks[1], (1, hidden1), 1.0 / math.sqrt(state_size))
    w2 = u(ks[2], (hidden1 + action_size, hidden2), 1.0 / math.sqrt(hidden2))
    b2 = u(ks[3], (1, hidden2), 1.0 / math.sqrt(hidden1 + action_size))
    w3 = u(ks[4], (hidden2, 1), 3e-3)
    b3 = u(ks[5], (1, 1), 1.0 / math.sqrt(hidden2))
    return {
        "w1": w1, "b1": b1,
        "w2_s": w2[:hidden1, :], "w2_a": w2[hidden1:, :], "b2": b2,
        "w3": w3, "b3": b3,
    }


def critic_reference(states, actions, params):
    """Pure-JAX reference of the PyTorch forward (with biases, two-pass var)."""
    if states.ndim == 1:
        states = states[None, :]
    h1 = jnp.dot(states, params["w1"], precision=_PREC) + params["b1"]
    mu1 = h1.mean(0, keepdims=True)
    var1 = ((h1 - mu1) ** 2).mean(0, keepdims=True)
    xs = jnp.maximum((h1 - mu1) / jnp.sqrt(var1 + BN_EPS), 0.0)
    h2 = (jnp.dot(xs, params["w2_s"], precision=_PREC)
          + jnp.dot(actions, params["w2_a"], precision=_PREC) + params["b2"])
    mu2 = h2.mean(0, keepdims=True)
    var2 = ((h2 - mu2) ** 2).mean(0, keepdims=True)
    x = jnp.maximum((h2 - mu2) / jnp.sqrt(var2 + BN_EPS), 0.0)
    return jnp.dot(x, params["w3"], precision=_PREC) + params["b3"]


if __name__ == "__main__":
    # Small shapes consistent with the module: Critic(state_size=16,
    # action_size=8, seed=0, hidden1=64, hidden2=32), batch of 8.
    B, STATE, ACTION, H1, H2 = 8, 16, 8, 64, 32

    key = jax.random.PRNGKey(0)
    k_params, k_s, k_a = jax.random.split(key, 3)

    params = init_critic_params(k_params, STATE, ACTION, H1, H2)
    states = jax.random.normal(k_s, (B, STATE), jnp.float32)
    actions = jax.random.normal(k_a, (B, ACTION), jnp.float32)

    # One-time prep (weight padding hoisted out of the call path).
    prepared = prepare_critic_params(params, STATE, ACTION, H1, H2)
    critic = make_critic_forward(prepared, STATE, ACTION, H1, H2)

    out = jax.block_until_ready(critic(states, actions))
    ref = critic_reference(states, actions, params)

    assert out.shape == (B, 1), out.shape
    assert jnp.allclose(out, ref, atol=1e-4, rtol=1e-3), (out, ref)

    print("KERNEL_OK")
</pallas_src>

<mosaic_0001>
module attributes {stable_mosaic.version = 11 : i64} {
  func.func @_critic_kernel(%arg0: memref<8x16xf32, #tpu.memory_space<vmem>>, %arg1: memref<8x128xf32, #tpu.memory_space<vmem>>, %arg2: memref<16x128xf32, #tpu.memory_space<vmem>>, %arg3: memref<128x128xf32, #tpu.memory_space<vmem>>, %arg4: memref<1x128xf32, #tpu.memory_space<vmem>>, %arg5: memref<1xf32, #tpu.memory_space<smem>>, %arg6: memref<8x1xf32, #tpu.memory_space<vmem>>) attributes {dimension_semantics = [], scalar_prefetch = 0 : i64, scratch_operands = 0 : i64, tpu.core_type = #tpu.core_type<tc>} {
    %c0 = arith.constant 0 : index
    %c0_0 = arith.constant 0 : index
    %0 = vector.load %arg0[%c0, %c0_0] : memref<8x16xf32, #tpu.memory_space<vmem>>, vector<8x16xf32>
    %c0_1 = arith.constant 0 : index
    %c0_2 = arith.constant 0 : index
    %1 = vector.load %arg2[%c0_1, %c0_2] : memref<16x128xf32, #tpu.memory_space<vmem>>, vector<16x128xf32>
    %cst = arith.constant dense<0.000000e+00> : vector<8x128xf32>
    %2 = tpu.matmul %0, %1, %cst {dimension_numbers = #tpu.dot_dimension_numbers<[1], [0], [0], [1], [0, 0, 1, 1], [], []>, precision = #tpu.contract_precision<fp32>} : vector<8x16xf32>, vector<16x128xf32>, vector<8x128xf32> -> vector<8x128xf32>
    %cst_3 = arith.constant dense<0.000000e+00> : vector<128xf32>
    %3 = vector.multi_reduction <add>, %2, %cst_3 [0] : vector<8x128xf32> to vector<128xf32>
    %4 = vector.shape_cast %3 : vector<128xf32> to vector<1x128xf32>
    %cst_4 = arith.constant 8.000000e+00 : f32
    %5 = vector.broadcast %cst_4 : f32 to vector<1x128xf32>
    %6 = arith.divf %4, %5 : vector<1x128xf32>
    %7 = arith.mulf %2, %2 : vector<8x128xf32>
    %cst_5 = arith.constant dense<0.000000e+00> : vector<128xf32>
    %8 = vector.multi_reduction <add>, %7, %cst_5 [0] : vector<8x128xf32> to vector<128xf32>
    %9 = vector.shape_cast %8 : vector<128xf32> to vector<1x128xf32>
    %cst_6 = arith.constant 8.000000e+00 : f32
    %10 = vector.broadcast %cst_6 : f32 to vector<1x128xf32>
    %11 = arith.divf %9, %10 : vector<1x128xf32>
    %12 = arith.mulf %6, %6 : vector<1x128xf32>
    %13 = arith.subf %11, %12 : vector<1x128xf32>
    %cst_7 = arith.constant 0.000000e+00 : f32
    %14 = vector.broadcast %cst_7 : f32 to vector<1x128xf32>
    %15 = arith.maximumf %13, %14 : vector<1x128xf32>
    %16 = vector.broadcast %6 : vector<1x128xf32> to vector<8x128xf32>
    %17 = arith.subf %2, %16 : vector<8x128xf32>
    %cst_8 = arith.constant 9.99999974E-6 : f32
    %18 = vector.broadcast %cst_8 : f32 to vector<1x128xf32>
    %19 = arith.addf %15, %18 : vector<1x128xf32>
    %20 = math.rsqrt %19 : vector<1x128xf32>
    %21 = vector.broadcast %20 : vector<1x128xf32> to vector<8x128xf32>
    %22 = arith.mulf %17, %21 : vector<8x128xf32>
    %cst_9 = arith.constant 0.000000e+00 : f32
    %23 = vector.broadcast %cst_9 : f32 to vector<8x128xf32>
    %24 = arith.maximumf %22, %23 : vector<8x128xf32>
    %c0_10 = arith.constant 0 : index
    %c0_11 = arith.constant 0 : index
    %25 = vector.load %arg1[%c0_10, %c0_11] : memref<8x128xf32, #tpu.memory_space<vmem>>, vector<8x128xf32>
    %26 = arith.addf %24, %25 : vector<8x128xf32>
    %c0_12 = arith.constant 0 : index
    %c0_13 = arith.constant 0 : index
    %27 = vector.load %arg3[%c0_12, %c0_13] : memref<128x128xf32, #tpu.memory_space<vmem>>, vector<128x128xf32>
    %cst_14 = arith.constant dense<0.000000e+00> : vector<8x128xf32>
    %28 = tpu.matmul %26, %27, %cst_14 {dimension_numbers = #tpu.dot_dimension_numbers<[1], [0], [0], [1], [0, 0, 1, 1], [], []>, precision = #tpu.contract_precision<fp32>} : vector<8x128xf32>, vector<128x128xf32>, vector<8x128xf32> -> vector<8x128xf32>
    %cst_15 = arith.constant dense<0.000000e+00> : vector<128xf32>
    %29 = vector.multi_reduction <add>, %28, %cst_15 [0] : vector<8x128xf32> to vector<128xf32>
    %30 = vector.shape_cast %29 : vector<128xf32> to vector<1x128xf32>
    %cst_16 = arith.constant 8.000000e+00 : f32
    %31 = vector.broadcast %cst_16 : f32 to vector<1x128xf32>
    %32 = arith.divf %30, %31 : vector<1x128xf32>
    %33 = arith.mulf %28, %28 : vector<8x128xf32>
    %cst_17 = arith.constant dense<0.000000e+00> : vector<128xf32>
    %34 = vector.multi_reduction <add>, %33, %cst_17 [0] : vector<8x128xf32> to vector<128xf32>
    %35 = vector.shape_cast %34 : vector<128xf32> to vector<1x128xf32>
    %cst_18 = arith.constant 8.000000e+00 : f32
    %36 = vector.broadcast %cst_18 : f32 to vector<1x128xf32>
    %37 = arith.divf %35, %36 : vector<1x128xf32>
    %38 = arith.mulf %32, %32 : vector<1x128xf32>
    %39 = arith.subf %37, %38 : vector<1x128xf32>
    %cst_19 = arith.constant 0.000000e+00 : f32
    %40 = vector.broadcast %cst_19 : f32 to vector<1x128xf32>
    %41 = arith.maximumf %39, %40 : vector<1x128xf32>
    %42 = vector.broadcast %32 : vector<1x128xf32> to vector<8x128xf32>
    %43 = arith.subf %28, %42 : vector<8x128xf32>
    %cst_20 = arith.constant 9.99999974E-6 : f32
    %44 = vector.broadcast %cst_20 : f32 to vector<1x128xf32>
    %45 = arith.addf %41, %44 : vector<1x128xf32>
    %46 = math.rsqrt %45 : vector<1x128xf32>
    %47 = vector.broadcast %46 : vector<1x128xf32> to vector<8x128xf32>
    %48 = arith.mulf %43, %47 : vector<8x128xf32>
    %cst_21 = arith.constant 0.000000e+00 : f32
    %49 = vector.broadcast %cst_21 : f32 to vector<8x128xf32>
    %50 = arith.maximumf %48, %49 : vector<8x128xf32>
    %c0_22 = arith.constant 0 : index
    %c0_23 = arith.constant 0 : index
    %51 = vector.load %arg4[%c0_22, %c0_23] : memref<1x128xf32, #tpu.memory_space<vmem>>, vector<1x128xf32>
    %52 = vector.broadcast %51 : vector<1x128xf32> to vector<8x128xf32>
    %53 = arith.mulf %50, %52 : vector<8x128xf32>
    %cst_24 = arith.constant dense<0.000000e+00> : vector<8xf32>
    %54 = vector.multi_reduction <add>, %53, %cst_24 [1] : vector<8x128xf32> to vector<8xf32>
    %55 = vector.shape_cast %54 : vector<8xf32> to vector<8x1xf32>
    %c0_25 = arith.constant 0 : index
    %56 = memref.load %arg5[%c0_25] : memref<1xf32, #tpu.memory_space<smem>>
    %57 = vector.broadcast %56 : f32 to vector<8x1xf32>
    %58 = arith.addf %55, %57 : vector<8x1xf32>
    %c0_26 = arith.constant 0 : index
    %c0_27 = arith.constant 0 : index
    %59 = vector.load %arg6[%c0_26, %c0_27] : memref<8x1xf32, #tpu.memory_space<vmem>>, vector<8x1xf32>
    tpu.vector_store %arg6[%c0_26, %c0_27], %58 {strides = array<i32>} : memref<8x1xf32, #tpu.memory_space<vmem>>, vector<8x1xf32>,
    return
  }
}

</mosaic_0001>

<llo_original>
// kernel: forward.1
$region0: #{forward.1}
  #allocation0 [shape = 'u32[]', space=smem, size = 0x4, offset = 0x4, fixed_abs, tag = 'smem constant byte address 0x4 - core index']
  #allocation1 [shape = 'u32[144,128]{1,0:T(1,128)}', space=vmem, size = 0x12000, scoped, tag = 'internal scratch']
  #allocation2 [shape = 'f32[1]{0:T(128)S(6)}', space=smem, size = 0x200, scoped, tag = 'scoped memory for forward.1']
  %s0 = inlined_call_operand.vmem [shape: f32[8,16], index: 0, kind: input, shape index: {}]
  %s1 = inlined_call_operand.vmem [shape: f32[8,128], index: 1, kind: input, shape index: {}]
  %s2 = inlined_call_operand.vmem [shape: f32[16,128], index: 2, kind: input, shape index: {}]
  %s3 = inlined_call_operand.hbm [shape: f32[128,128], index: 3, kind: input, shape index: {}]
  %s4 = inlined_call_operand.vmem [shape: f32[1,128], index: 4, kind: input, shape index: {}]
  %s5 = inlined_call_operand.<no memory space> [shape: f32[1], index: 5, kind: input, shape index: {}]
  %s6 = inlined_call_operand.vmem [shape: f32[8,1], index: 6, kind: output, shape index: {}]
  %s7 = sld [smem:[#allocation0]]
  $region38: #{forward.1} parent=0
    _
  %s9 = ssub.s32 1, %s7
  %s10 = scalar_select 0, %s9, %s7
  %11 = sst [smem:[#allocation2]] %s5
  $region1: #{forward.1} parent=0
    #allocation3 [shape = 'u8[65536]{0}', space=vmem, size = 0x10000, scoped, tag = 'input window, operand 3, single buffered']
    #allocation4 [shape = 's32[1]{0}', space=sflag, size = 0x4, scoped, tag = 'scoped memory for forward.1']
    %12 = vsyncpa [#allocation4], 0
    // Predicated region
    $region2: #{forward.1} parent=1 // pred_check
      _
    $region3: #{forward.1} parent=1 // pred_check_branch
      %14 = sbr.rel (0) target = $region5
    $region4: #{forward.1} parent=1 // pred_region
      _
    $region5: #{forward.1} parent=1 // pred_fallthru
      _
    // Predicated region
    $region6: #{forward.1} parent=1 // pred_check
      _
    $region7: #{forward.1} parent=1 // pred_check_branch
      %16 = sbr.rel (0) target = $region9
    $region8: #{forward.1} parent=1 // pred_region
      _
    $region9: #{forward.1} parent=1 // pred_fallthru
      _
    // Predicated region
    $region10: #{forward.1} parent=1 // pred_check
      _
    $region11: #{forward.1} parent=1 // pred_check_branch
      %18 = sbr.rel (0) target = $region13
    $region12: #{forward.1} parent=1 // pred_region
      _
    $region13: #{forward.1} parent=1 // pred_fallthru
      _
    // Predicated region
    $region14: #{forward.1} parent=1 // pred_check
      _
    $region15: #{forward.1} parent=1 // pred_check_branch
      %20 = sbr.rel (0) target = $region17
    $region16: #{forward.1} parent=1 // pred_region
      %s22 = ssub.s32 2048, 2048
      %23 = vsyncadd [#allocation4], %s22
      %s24 = sshll.u32 [#allocation3], 4
      %s25 = int_to_ptr.vmem [resolvable:$true] %s24
      %30 = dma.hbm_to_vmem [thread:$0]  %s3, 2048, %s25, [#allocation4], 128, 128, 8
    $region17: #{forward.1} parent=1 // pred_fallthru
      _
    // Predicated region
    $region18: #{forward.1} parent=1 // pred_check
      _
    $region19: #{forward.1} parent=1 // pred_check_branch
      %32 = sbr.rel (0) target = $region21
    $region20: #{forward.1} parent=1 // pred_region
      _
    $region21: #{forward.1} parent=1 // pred_fallthru
      _
    // Predicated region
    $region22: #{forward.1} parent=1 // pred_check
      _
    $region23: #{forward.1} parent=1 // pred_check_branch
      %34 = sbr.rel (0) target = $region25
    $region24: #{forward.1} parent=1 // pred_region
      _
    $region25: #{forward.1} parent=1 // pred_fallthru
      _
    // Predicated region
    $region26: #{forward.1} parent=1 // pred_check
      _
    $region27: #{forward.1} parent=1 // pred_check_branch
      %36 = sbr.rel (0) target = $region29
    $region28: #{forward.1} parent=1 // pred_region
      %37 = dma.done [#allocation4], 2048
    $region29: #{forward.1} parent=1 // pred_fallthru
      _
    %v38 = vld [vmem:[%s0] sm:$0xff]
    %v39 = vld [vmem:[%s2] sm:$0xff]
    %v40 = vld [vmem:[%s2 + $0x8] sm:$0xff]
    %vm41 = vcmask 130048
    %v43 = vsel %vm41, %v38, 0
    %45 = vmatprep.subr.mxu0 0.0
    %v46 = vand.u32 %v39, 4294901760
    %47 = vmatpush1.msra.mxu0 %v46
    %48 = vmatprep.subr.mxu0 0.0
    %v49 = vand.u32 %v40, 4294901760
    %50 = vmatpush1.msra.mxu0 %v49
    %51 = vmatprep.subr.mxu0 0.0
    %52 = vmatpush1.msra.mxu0 0.0
    %53 = vmatprep.subr.mxu0 0.0
    %54 = vmatpush1.msra.mxu0 0.0
    %55 = vmatprep.subr.mxu0 0.0
    %56 = vmatpush1.msra.mxu0 0.0
    %57 = vmatprep.subr.mxu0 0.0
    %58 = vmatpush1.msra.mxu0 0.0
    %59 = vmatprep.subr.mxu0 0.0
    %60 = vmatpush1.msra.mxu0 0.0
    %61 = vmatprep.subr.mxu0 0.0
    %62 = vmatpush1.msra.mxu0 0.0
    %63 = vmatprep.subr.mxu0 0.0
    %64 = vmatpush1.msra.mxu0 0.0
    %65 = vmatprep.subr.mxu0 0.0
    %66 = vmatpush1.msra.mxu0 0.0
    %67 = vmatprep.subr.mxu0 0.0
    %68 = vmatpush1.msra.mxu0 0.0
    %69 = vmatprep.subr.mxu0 0.0
    %70 = vmatpush1.msra.mxu0 0.0
    %71 = vmatprep.subr.mxu0 0.0
    %72 = vmatpush1.msra.mxu0 0.0
    %73 = vmatprep.subr.mxu0 0.0
    %74 = vmatpush1.msra.mxu0 0.0
    %75 = vmatprep.subr.mxu0 0.0
    %76 = vmatpush1.msra.mxu0 0.0
    %77 = vmatprep.subr.mxu0 0.0
    %78 = vmatpush1.msra.mxu0 0.0
    %79 = vmatprep.subr.mxu0 0.0
    %80 = vmatpush1.msra.mxu0 0.0
    %81 = vmatprep.subr.mxu0 0.0
    %82 = vmatpush1.msra.mxu0 0.0
    %83 = vmatprep.subr.mxu0 0.0
    %84 = vmatpush1.msra.mxu0 0.0
    %85 = vmatprep.subr.mxu0 0.0
    %86 = vmatpush1.msra.mxu0 0.0
    %87 = vmatprep.subr.mxu0 0.0
    %88 = vmatpush1.msra.mxu0 0.0
    %89 = vmatprep.subr.mxu0 0.0
    %90 = vmatpush1.msra.mxu0 0.0
    %91 = vmatprep.subr.mxu0 0.0
    %92 = vmatpush1.msra.mxu0 0.0
    %93 = vmatprep.subr.mxu0 0.0
    %94 = vmatpush1.msra.mxu0 0.0
    %95 = vmatprep.subr.mxu0 0.0
    %96 = vmatpush1.msra.mxu0 0.0
    %97 = vmatprep.subr.mxu0 0.0
    %98 = vmatpush1.msra.mxu0 0.0
    %99 = vmatprep.subr.mxu0 0.0
    %100 = vmatpush1.msra.mxu0 0.0
    %101 = vmatprep.subr.mxu0 0.0
    %102 = vmatpush1.msra.mxu0 0.0
    %103 = vmatprep.subr.mxu0 0.0
    %104 = vmatpush1.msra.mxu0 0.0
    %105 = vmatprep.subr.mxu0 0.0
    %106 = vmatpush1.msra.mxu0 0.0
    %107 = vmatprep.subr.mxu0 0.0
    %108 = vmatpush1.msra.mxu0 0.0
    %109 = vmatprep.subr.mxu0 0.0
    %110 = vmatpush1.msra.mxu0 0.0
    %111 = vmatprep.mubr.f32.mxu0 0.0
    %v112 = vand.u32 %v43, 4294901760
    %v113 = vsub.f32 %v43, %v112
    %v114 = vand.u32 %v113, 4294901760
    %v115 = vsub.f32 %v113, %v114
    %v116 = vand.u32 %v115, 4294901760
    %117 = vmatmul.mubr.f32.gmra.mrb[0].mxu0 %v116
    %v118 = vpop.f32.mrb[0].mxu0
    %v119 = vadd.f32 0.0, %v118
    %v120 = vpop.f32.mrb[0].mxu0
    %121 = vdwg.mxu0
    %122 = vmatprep.subr.mxu0 0.0
    %v123 = vand.u32 %v39, 4294901760
    %v124 = vsub.f32 %v39, %v123
    %v125 = vand.u32 %v124, 4294901760
    %v126 = vsub.f32 %v124, %v125
    %v127 = vand.u32 %v126, 4294901760
    %128 = vmatpush1.msra.mxu0 %v127
    %129 = vmatprep.subr.mxu0 0.0
    %v130 = vand.u32 %v40, 4294901760
    %v131 = vsub.f32 %v40, %v130
    %v132 = vand.u32 %v131, 4294901760
    %v133 = vsub.f32 %v131, %v132
    %v134 = vand.u32 %v133, 4294901760
    %135 = vmatpush1.msra.mxu0 %v134
    %136 = vmatprep.subr.mxu0 0.0
    %137 = vmatpush1.msra.mxu0 0.0
    %138 = vmatprep.subr.mxu0 0.0
    %139 = vmatpush1.msra.mxu0 0.0
    %140 = vmatprep.subr.mxu0 0.0
    %141 = vmatpush1.msra.mxu0 0.0
    %142 = vmatprep.subr.mxu0 0.0
    %143 = vmatpush1.msra.mxu0 0.0
    %144 = vmatprep.subr.mxu0 0.0
    %145 = vmatpush1.msra.mxu0 0.0
    %146 = vmatprep.subr.mxu0 0.0
    %147 = vmatpush1.msra.mxu0 0.0
    %148 = vmatprep.subr.mxu0 0.0
    %149 = vmatpush1.msra.mxu0 0.0
    %150 = vmatprep.subr.mxu0 0.0
    %151 = vmatpush1.msra.mxu0 0.0
    %152 = vmatprep.subr.mxu0 0.0
    %153 = vmatpush1.msra.mxu0 0.0
    %154 = vmatprep.subr.mxu0 0.0
    %155 = vmatpush1.msra.mxu0 0.0
    %156 = vmatprep.subr.mxu0 0.0
    %157 = vmatpush1.msra.mxu0 0.0
    %158 = vmatprep.subr.mxu0 0.0
    %159 = vmatpush1.msra.mxu0 0.0
    %160 = vmatprep.subr.mxu0 0.0
    %161 = vmatpush1.msra.mxu0 0.0
    %162 = vmatprep.subr.mxu0 0.0
    %163 = vmatpush1.msra.mxu0 0.0
    %164 = vmatprep.subr.mxu0 0.0
    %165 = vmatpush1.msra.mxu0 0.0
    %166 = vmatprep.subr.mxu0 0.0
    %167 = vmatpush1.msra.mxu0 0.0
    %168 = vmatprep.subr.mxu0 0.0
    %169 = vmatpush1.msra.mxu0 0.0
    %170 = vmatprep.subr.mxu0 0.0
    %171 = vmatpush1.msra.mxu0 0.0
    %172 = vmatprep.subr.mxu0 0.0
    %173 = vmatpush1.msra.mxu0 0.0
    %174 = vmatprep.subr.mxu0 0.0
    %175 = vmatpush1.msra.mxu0 0.0
    %176 = vmatprep.subr.mxu0 0.0
    %177 = vmatpush1.msra.mxu0 0.0
    %178 = vmatprep.subr.mxu0 0.0
    %179 = vmatpush1.msra.mxu0 0.0
    %180 = vmatprep.subr.mxu0 0.0
    %181 = vmatpush1.msra.mxu0 0.0
    %182 = vmatprep.subr.mxu0 0.0
    %183 = vmatpush1.msra.mxu0 0.0
    %184 = vmatprep.subr.mxu0 0.0
    %185 = vmatpush1.msra.mxu0 0.0
    %186 = vmatprep.subr.mxu0 0.0
    %187 = vmatpush1.msra.mxu0 0.0
    %188 = vmatprep.subr.mxu0 0.0
    %189 = vmatpush1.msra.mxu0 0.0
    %190 = vmatprep.subr.mxu0 0.0
    %191 = vmatpush1.msra.mxu0 0.0
    %192 = vmatprep.subr.mxu0 0.0
    %193 = vmatpush1.msra.mxu0 0.0
    %194 = vmatprep.subr.mxu0 0.0
    %195 = vmatpush1.msra.mxu0 0.0
    %196 = vmatprep.mubr.f32.mxu0 0.0
    %v197 = vand.u32 %v43, 4294901760
    %198 = vmatmul.mubr.f32.gmra.mrb[0].mxu0 %v197
    %v199 = vpop.f32.mrb[0].mxu0
    %v200 = vadd.f32 %v119, %v199
    %v201 = vpop.f32.mrb[0].mxu0
    %202 = vdwg.mxu0
    %203 = vmatprep.subr.mxu0 0.0
    %v204 = vand.u32 %v39, 4294901760
    %v205 = vsub.f32 %v39, %v204
    %206 = vmatpush1.msra.mxu0 %v205
    %207 = vmatprep.subr.mxu0 0.0
    %v208 = vand.u32 %v40, 4294901760
    %v209 = vsub.f32 %v40, %v208
    %210 = vmatpush1.msra.mxu0 %v209
    %211 = vmatprep.subr.mxu0 0.0
    %212 = vmatpush1.msra.mxu0 0.0
    %213 = vmatprep.subr.mxu0 0.0
    %214 = vmatpush1.msra.mxu0 0.0
    %215 = vmatprep.subr.mxu0 0.0
    %216 = vmatpush1.msra.mxu0 0.0
    %217 = vmatprep.subr.mxu0 0.0
    %218 = vmatpush1.msra.mxu0 0.0
    %219 = vmatprep.subr.mxu0 0.0
    %220 = vmatpush1.msra.mxu0 0.0
    %221 = vmatprep.subr.mxu0 0.0
    %222 = vmatpush1.msra.mxu0 0.0
    %223 = vmatprep.subr.mxu0 0.0
    %224 = vmatpush1.msra.mxu0 0.0
    %225 = vmatprep.subr.mxu0 0.0
    %226 = vmatpush1.msra.mxu0 0.0
    %227 = vmatprep.subr.mxu0 0.0
    %228 = vmatpush1.msra.mxu0 0.0
    %229 = vmatprep.subr.mxu0 0.0
    %230 = vmatpush1.msra.mxu0 0.0
    %231 = vmatprep.subr.mxu0 0.0
    %232 = vmatpush1.msra.mxu0 0.0
    %233 = vmatprep.subr.mxu0 0.0
    %234 = vmatpush1.msra.mxu0 0.0
    %235 = vmatprep.subr.mxu0 0.0
    %236 = vmatpush1.msra.mxu0 0.0
    %237 = vmatprep.subr.mxu0 0.0
    %238 = vmatpush1.msra.mxu0 0.0
    %239 = vmatprep.subr.mxu0 0.0
    %240 = vmatpush1.msra.mxu0 0.0
    %241 = vmatprep.subr.mxu0 0.0
    %242 = vmatpush1.msra.mxu0 0.0
    %243 = vmatprep.subr.mxu0 0.0
    %244 = vmatpush1.msra.mxu0 0.0
    %245 = vmatprep.subr.mxu0 0.0
    %246 = vmatpush1.msra.mxu0 0.0
    %247 = vmatprep.subr.mxu0 0.0
    %248 = vmatpush1.msra.mxu0 0.0
    %249 = vmatprep.subr.mxu0 0.0
    %250 = vmatpush1.msra.mxu0 0.0
    %251 = vmatprep.subr.mxu0 0.0
    %252 = vmatpush1.msra.mxu0 0.0
    %253 = vmatprep.subr.mxu0 0.0
    %254 = vmatpush1.msra.mxu0 0.0
    %255 = vmatprep.subr.mxu0 0.0
    %256 = vmatpush1.msra.mxu0 0.0
    %257 = vmatprep.subr.mxu0 0.0
    %258 = vmatpush1.msra.mxu0 0.0
    %259 = vmatprep.subr.mxu0 0.0
    %260 = vmatpush1.msra.mxu0 0.0
    %261 = vmatprep.subr.mxu0 0.0
    %262 = vmatpush1.msra.mxu0 0.0
    %263 = vmatprep.subr.mxu0 0.0
    %264 = vmatpush1.msra.mxu0 0.0
    %265 = vmatprep.subr.mxu0 0.0
    %266 = vmatpush1.msra.mxu0 0.0
    %267 = vmatprep.subr.mxu0 0.0
    %268 = vmatpush1.msra.mxu0 0.0
    %269 = vmatprep.subr.mxu0 0.0
    %270 = vmatpush1.msra.mxu0 0.0
    %271 = vmatprep.mubr.f32.mxu0 0.0
    %v272 = vand.u32 %v43, 4294901760
    %v273 = vsub.f32 %v43, %v272
    %274 = vmatmul.mubr.f32.gmra.mrb[0].mxu0 %v273
    %v275 = vpop.f32.mrb[0].mxu0
    %v276 = vadd.f32 %v200, %v275
    %v277 = vpop.f32.mrb[0].mxu0
    %278 = vdwg.mxu0
    %279 = vmatprep.subr.mxu0 0.0
    %v280 = vand.u32 %v39, 4294901760
    %281 = vmatpush1.msra.mxu0 %v280
    %282 = vmatprep.subr.mxu0 0.0
    %v283 = vand.u32 %v40, 4294901760
    %284 = vmatpush1.msra.mxu0 %v283
    %285 = vmatprep.subr.mxu0 0.0
    %286 = vmatpush1.msra.mxu0 0.0
    %287 = vmatprep.subr.mxu0 0.0
    %288 = vmatpush1.msra.mxu0 0.0
    %289 = vmatprep.subr.mxu0 0.0
    %290 = vmatpush1.msra.mxu0 0.0
    %291 = vmatprep.subr.mxu0 0.0
    %292 = vmatpush1.msra.mxu0 0.0
    %293 = vmatprep.subr.mxu0 0.0
    %294 = vmatpush1.msra.mxu0 0.0
    %295 = vmatprep.subr.mxu0 0.0
    %296 = vmatpush1.msra.mxu0 0.0
    %297 = vmatprep.subr.mxu0 0.0
    %298 = vmatpush1.msra.mxu0 0.0
    %299 = vmatprep.subr.mxu0 0.0
    %300 = vmatpush1.msra.mxu0 0.0
    %301 = vmatprep.subr.mxu0 0.0
    %302 = vmatpush1.msra.mxu0 0.0
    %303 = vmatprep.subr.mxu0 0.0
    %304 = vmatpush1.msra.mxu0 0.0
    %305 = vmatprep.subr.mxu0 0.0
    %306 = vmatpush1.msra.mxu0 0.0
    %307 = vmatprep.subr.mxu0 0.0
    %308 = vmatpush1.msra.mxu0 0.0
    %309 = vmatprep.subr.mxu0 0.0
    %310 = vmatpush1.msra.mxu0 0.0
    %311 = vmatprep.subr.mxu0 0.0
    %312 = vmatpush1.msra.mxu0 0.0
    %313 = vmatprep.subr.mxu0 0.0
    %314 = vmatpush1.msra.mxu0 0.0
    %315 = vmatprep.subr.mxu0 0.0
    %316 = vmatpush1.msra.mxu0 0.0
    %317 = vmatprep.subr.mxu0 0.0
    %318 = vmatpush1.msra.mxu0 0.0
    %319 = vmatprep.subr.mxu0 0.0
    %320 = vmatpush1.msra.mxu0 0.0
    %321 = vmatprep.subr.mxu0 0.0
    %322 = vmatpush1.msra.mxu0 0.0
    %323 = vmatprep.subr.mxu0 0.0
    %324 = vmatpush1.msra.mxu0 0.0
    %325 = vmatprep.subr.mxu0 0.0
    %326 = vmatpush1.msra.mxu0 0.0
    %327 = vmatprep.subr.mxu0 0.0
    %328 = vmatpush1.msra.mxu0 0.0
    %329 = vmatprep.subr.mxu0 0.0
    %330 = vmatpush1.msra.mxu0 0.0
    %331 = vmatprep.subr.mxu0 0.0
    %332 = vmatpush1.msra.mxu0 0.0
    %333 = vmatprep.subr.mxu0 0.0
    %334 = vmatpush1.msra.mxu0 0.0
    %335 = vmatprep.subr.mxu0 0.0
    %336 = vmatpush1.msra.mxu0 0.0
    %337 = vmatprep.subr.mxu0 0.0
    %338 = vmatpush1.msra.mxu0 0.0
    %339 = vmatprep.subr.mxu0 0.0
    %340 = vmatpush1.msra.mxu0 0.0
    %341 = vmatprep.subr.mxu0 0.0
    %342 = vmatpush1.msra.mxu0 0.0
    %343 = vmatprep.subr.mxu0 0.0
    %344 = vmatpush1.msra.mxu0 0.0
    %345 = vmatprep.mubr.f32.mxu0 0.0
    %v346 = vand.u32 %v43, 4294901760
    %v347 = vsub.f32 %v43, %v346
    %v348 = vand.u32 %v347, 4294901760
    %349 = vmatmul.mubr.f32.gmra.mrb[0].mxu0 %v348
    %v350 = vpop.f32.mrb[0].mxu0
    %v351 = vadd.f32 %v276, %v350
    %v352 = vpop.f32.mrb[0].mxu0
    %353 = vdwg.mxu0
    %354 = vmatprep.subr.mxu0 0.0
    %v355 = vand.u32 %v39, 4294901760
    %v356 = vsub.f32 %v39, %v355
    %v357 = vand.u32 %v356, 4294901760
    %358 = vmatpush1.msra.mxu0 %v357
    %359 = vmatprep.subr.mxu0 0.0
    %v360 = vand.u32 %v40, 4294901760
    %v361 = vsub.f32 %v40, %v360
    %v362 = vand.u32 %v361, 4294901760
    %363 = vmatpush1.msra.mxu0 %v362
    %364 = vmatprep.subr.mxu0 0.0
    %365 = vmatpush1.msra.mxu0 0.0
    %366 = vmatprep.subr.mxu0 0.0
    %367 = vmatpush1.msra.mxu0 0.0
    %368 = vmatprep.subr.mxu0 0.0
    %369 = vmatpush1.msra.mxu0 0.0
    %370 = vmatprep.subr.mxu0 0.0
    %371 = vmatpush1.msra.mxu0 0.0
    %372 = vmatprep.subr.mxu0 0.0
    %373 = vmatpush1.msra.mxu0 0.0
    %374 = vmatprep.subr.mxu0 0.0
    %375 = vmatpush1.msra.mxu0 0.0
    %376 = vmatprep.subr.mxu0 0.0
    %377 = vmatpush1.msra.mxu0 0.0
    %378 = vmatprep.subr.mxu0 0.0
    %379 = vmatpush1.msra.mxu0 0.0
    %380 = vmatprep.subr.mxu0 0.0
    %381 = vmatpush1.msra.mxu0 0.0
    %382 = vmatprep.subr.mxu0 0.0
    %383 = vmatpush1.msra.mxu0 0.0
    %384 = vmatprep.subr.mxu0 0.0
    %385 = vmatpush1.msra.mxu0 0.0
    %386 = vmatprep.subr.mxu0 0.0
    %387 = vmatpush1.msra.mxu0 0.0
    %388 = vmatprep.subr.mxu0 0.0
    %389 = vmatpush1.msra.mxu0 0.0
    %390 = vmatprep.subr.mxu0 0.0
    %391 = vmatpush1.msra.mxu0 0.0
    %392 = vmatprep.subr.mxu0 0.0
    %393 = vmatpush1.msra.mxu0 0.0
    %394 = vmatprep.subr.mxu0 0.0
    %395 = vmatpush1.msra.mxu0 0.0
    %396 = vmatprep.subr.mxu0 0.0
    %397 = vmatpush1.msra.mxu0 0.0
    %398 = vmatprep.subr.mxu0 0.0
    %399 = vmatpush1.msra.mxu0 0.0
    %400 = vmatprep.subr.mxu0 0.0
    %401 = vmatpush1.msra.mxu0 0.0
    %402 = vmatprep.subr.mxu0 0.0
    %403 = vmatpush1.msra.mxu0 0.0
    %404 = vmatprep.subr.mxu0 0.0
    %405 = vmatpush1.msra.mxu0 0.0
    %406 = vmatprep.subr.mxu0 0.0
    %407 = vmatpush1.msra.mxu0 0.0
    %408 = vmatprep.subr.mxu0 0.0
    %409 = vmatpush1.msra.mxu0 0.0
    %410 = vmatprep.subr.mxu0 0.0
    %411 = vmatpush1.msra.mxu0 0.0
    %412 = vmatprep.subr.mxu0 0.0
    %413 = vmatpush1.msra.mxu0 0.0
    %414 = vmatprep.subr.mxu0 0.0
    %415 = vmatpush1.msra.mxu0 0.0
    %416 = vmatprep.subr.mxu0 0.0
    %417 = vmatpush1.msra.mxu0 0.0
    %418 = vmatprep.subr.mxu0 0.0
    %419 = vmatpush1.msra.mxu0 0.0
    %420 = vmatprep.subr.mxu0 0.0
    %421 = vmatpush1.msra.mxu0 0.0
    %422 = vmatprep.subr.mxu0 0.0
    %423 = vmatpush1.msra.mxu0 0.0
    %424 = vmatprep.mubr.f32.mxu0 0.0
    %v425 = vand.u32 %v43, 4294901760
    %426 = vmatmul.mubr.f32.gmra.mrb[0].mxu0 %v425
    %v427 = vpop.f32.mrb[0].mxu0
    %v428 = vadd.f32 %v351, %v427
    %v429 = vpop.f32.mrb[0].mxu0
    %430 = vdwg.mxu0
    %431 = vmatprep.subr.mxu0 0.0
    %v432 = vand.u32 %v39, 4294901760
    %433 = vmatpush1.msra.mxu0 %v432
    %434 = vmatprep.subr.mxu0 0.0
    %v435 = vand.u32 %v40, 4294901760
    %436 = vmatpush1.msra.mxu0 %v435
    %437 = vmatprep.subr.mxu0 0.0
    %438 = vmatpush1.msra.mxu0 0.0
    %439 = vmatprep.subr.mxu0 0.0
    %440 = vmatpush1.msra.mxu0 0.0
    %441 = vmatprep.subr.mxu0 0.0
    %442 = vmatpush1.msra.mxu0 0.0
    %443 = vmatprep.subr.mxu0 0.0
    %444 = vmatpush1.msra.mxu0 0.0
    %445 = vmatprep.subr.mxu0 0.0
    %446 = vmatpush1.msra.mxu0 0.0
    %447 = vmatprep.subr.mxu0 0.0
    %448 = vmatpush1.msra.mxu0 0.0
    %449 = vmatprep.subr.mxu0 0.0
    %450 = vmatpush1.msra.mxu0 0.0
    %451 = vmatprep.subr.mxu0 0.0
    %452 = vmatpush1.msra.mxu0 0.0
    %453 = vmatprep.subr.mxu0 0.0
    %454 = vmatpush1.msra.mxu0 0.0
    %455 = vmatprep.subr.mxu0 0.0
    %456 = vmatpush1.msra.mxu0 0.0
    %457 = vmatprep.subr.mxu0 0.0
    %458 = vmatpush1.msra.mxu0 0.0
    %459 = vmatprep.subr.mxu0 0.0
    %460 = vmatpush1.msra.mxu0 0.0
    %461 = vmatprep.subr.mxu0 0.0
    %462 = vmatpush1.msra.mxu0 0.0
    %463 = vmatprep.subr.mxu0 0.0
    %464 = vmatpush1.msra.mxu0 0.0
    %465 = vmatprep.subr.mxu0 0.0
    %466 = vmatpush1.msra.mxu0 0.0
    %467 = vmatprep.subr.mxu0 0.0
    %468 = vmatpush1.msra.mxu0 0.0
    %469 = vmatprep.subr.mxu0 0.0
    %470 = vmatpush1.msra.mxu0 0.0
    %471 = vmatprep.subr.mxu0 0.0
    %472 = vmatpush1.msra.mxu0 0.0
    %473 = vmatprep.subr.mxu0 0.0
    %474 = vmatpush1.msra.mxu0 0.0
    %475 = vmatprep.subr.mxu0 0.0
    %476 = vmatpush1.msra.mxu0 0.0
    %477 = vmatprep.subr.mxu0 0.0
    %478 = vmatpush1.msra.mxu0 0.0
    %479 = vmatprep.subr.mxu0 0.0
    %480 = vmatpush1.msra.mxu0 0.0
    %481 = vmatprep.subr.mxu0 0.0
    %482 = vmatpush1.msra.mxu0 0.0
    %483 = vmatprep.subr.mxu0 0.0
    %484 = vmatpush1.msra.mxu0 0.0
    %485 = vmatprep.subr.mxu0 0.0
    %486 = vmatpush1.msra.mxu0 0.0
    %487 = vmatprep.subr.mxu0 0.0
    %488 = vmatpush1.msra.mxu0 0.0
    %489 = vmatprep.subr.mxu0 0.0
    %490 = vmatpush1.msra.mxu0 0.0
    %491 = vmatprep.subr.mxu0 0.0
    %492 = vmatpush1.msra.mxu0 0.0
    %493 = vmatprep.subr.mxu0 0.0
    %494 = vmatpush1.msra.mxu0 0.0
    %495 = vmatprep.subr.mxu0 0.0
    %496 = vmatpush1.msra.mxu0 0.0
    %497 = vmatprep.mubr.f32.mxu0 0.0
    %v498 = vand.u32 %v43, 4294901760
    %499 = vmatmul.mubr.f32.gmra.mrb[0].mxu0 %v498
    %v500 = vpop.f32.mrb[0].mxu0
    %v501 = vadd.f32 %v428, %v500
    %v502 = vpop.f32.mrb[0].mxu0
    %503 = vdwg.mxu0
    %v504 = vrot.slane %v501, 4
    %v505 = vadd.f32 %v501, %v504
    %v506 = vrot.slane %v505, 2
    %v507 = vadd.f32 %v505, %v506
    %v508 = vrot.slane %v507, 1
    %v509 = vadd.f32 %v507, %v508
    %v510 = vrcp.pop 8.0
    %v511 = vmul.f32 %v509, %v510
    %v512 = vmul.f32 %v501, %v501
    %v513 = vrot.slane %v512, 4
    %v514 = vadd.f32 %v512, %v513
    %v515 = vrot.slane %v514, 2
    %v516 = vadd.f32 %v514, %v515
    %v517 = vrot.slane %v516, 1
    %v518 = vadd.f32 %v516, %v517
    %v519 = vmul.f32 %v518, %v510
    %v520 = vmul.f32 %v511, %v511
    %v521 = vsub.f32 %v519, %v520
    %v522 = vmax.f32 %v521, 0.0
    %v523 = vsub.f32 %v501, %v511
    %v524 = vadd.f32 %v522, 1e-05
    %v525 = vrsqrt.pop %v524
    %v526 = vmul.f32 %v523, %v525
    %v527 = vmax.f32 %v526, 0.0
    %v528 = vld [vmem:[%s1] sm:$0xff]
    %v529 = vadd.f32 %v527, %v528
    %v530 = vld [vmem:[#allocation3] sm:$0xff]
    %v531 = vld [vmem:[#allocation3 + $0x8] sm:$0xff]
    %v532 = vld [vmem:[#allocation3 + $0x10] sm:$0xff]
    %v533 = vld [vmem:[#allocation3 + $0x18] sm:$0xff]
    %v534 = vld [vmem:[#allocation3 + $0x20] sm:$0xff]
    %v535 = vld [vmem:[#allocation3 + $0x28] sm:$0xff]
    %v536 = vld [vmem:[#allocation3 + $0x30] sm:$0xff]
    %v537 = vld [vmem:[#allocation3 + $0x38] sm:$0xff]
    %v538 = vld [vmem:[#allocation3 + $0x40] sm:$0xff]
    %v539 = vld [vmem:[#allocation3 + $0x48] sm:$0xff]
    %v540 = vld [vmem:[#allocation3 + $0x50] sm:$0xff]
    %v541 = vld [vmem:[#allocation3 + $0x58] sm:$0xff]
    %v542 = vld [vmem:[#allocation3 + $0x60] sm:$0xff]
    %v543 = vld [vmem:[#allocation3 + $0x68] sm:$0xff]
    %v544 = vld [vmem:[#allocation3 + $0x70] sm:$0xff]
    %v545 = vld [vmem:[#allocation3 + $0x78] sm:$0xff]
    %546 = vmatprep.subr.mxu0 0.0
    %v547 = vand.u32 %v530, 4294901760
    %548 = vmatpush1.msra.mxu0 %v547
    %549 = vmatprep.subr.mxu0 0.0
    %v550 = vand.u32 %v531, 4294901760
    %551 = vmatpush1.msra.mxu0 %v550
    %552 = vmatprep.subr.mxu0 0.0
    %v553 = vand.u32 %v532, 4294901760
    %554 = vmatpush1.msra.mxu0 %v553
    %555 = vmatprep.subr.mxu0 0.0
    %v556 = vand.u32 %v533, 4294901760
    %557 = vmatpush1.msra.mxu0 %v556
    %558 = vmatprep.subr.mxu0 0.0
    %v559 = vand.u32 %v534, 4294901760
    %560 = vmatpush1.msra.mxu0 %v559
    %561 = vmatprep.subr.mxu0 0.0
    %v562 = vand.u32 %v535, 4294901760
    %563 = vmatpush1.msra.mxu0 %v562
    %564 = vmatprep.subr.mxu0 0.0
    %v565 = vand.u32 %v536, 4294901760
    %566 = vmatpush1.msra.mxu0 %v565
    %567 = vmatprep.subr.mxu0 0.0
    %v568 = vand.u32 %v537, 4294901760
    %569 = vmatpush1.msra.mxu0 %v568
    %570 = vmatprep.subr.mxu0 0.0
    %v571 = vand.u32 %v538, 4294901760
    %572 = vmatpush1.msra.mxu0 %v571
    %573 = vmatprep.subr.mxu0 0.0
    %v574 = vand.u32 %v539, 4294901760
    %575 = vmatpush1.msra.mxu0 %v574
    %576 = vmatprep.subr.mxu0 0.0
    %v577 = vand.u32 %v540, 4294901760
    %578 = vmatpush1.msra.mxu0 %v577
    %579 = vmatprep.subr.mxu0 0.0
    %v580 = vand.u32 %v541, 4294901760
    %581 = vmatpush1.msra.mxu0 %v580
    %582 = vmatprep.subr.mxu0 0.0
    %v583 = vand.u32 %v542, 4294901760
    %584 = vmatpush1.msra.mxu0 %v583
    %585 = vmatprep.subr.mxu0 0.0
    %v586 = vand.u32 %v543, 4294901760
    %587 = vmatpush1.msra.mxu0 %v586
    %588 = vmatprep.subr.mxu0 0.0
    %v589 = vand.u32 %v544, 4294901760
    %590 = vmatpush1.msra.mxu0 %v589
    %591 = vmatprep.subr.mxu0 0.0
    %v592 = vand.u32 %v545, 4294901760
    %593 = vmatpush1.msra.mxu0 %v592
    %594 = vmatprep.subr.mxu0 0.0
    %595 = vmatpush1.msra.mxu0 0.0
    %596 = vmatprep.subr.mxu0 0.0
    %597 = vmatpush1.msra.mxu0 0.0
    %598 = vmatprep.subr.mxu0 0.0
    %599 = vmatpush1.msra.mxu0 0.0
    %600 = vmatprep.subr.mxu0 0.0
    %601 = vmatpush1.msra.mxu0 0.0
    %602 = vmatprep.subr.mxu0 0.0
    %603 = vmatpush1.msra.mxu0 0.0
    %604 = vmatprep.subr.mxu0 0.0
    %605 = vmatpush1.msra.mxu0 0.0
    %606 = vmatprep.subr.mxu0 0.0
    %607 = vmatpush1.msra.mxu0 0.0
    %608 = vmatprep.subr.mxu0 0.0
    %609 = vmatpush1.msra.mxu0 0.0
    %610 = vmatprep.subr.mxu0 0.0
    %611 = vmatpush1.msra.mxu0 0.0
    %612 = vmatprep.subr.mxu0 0.0
    %613 = vmatpush1.msra.mxu0 0.0
    %614 = vmatprep.subr.mxu0 0.0
    %615 = vmatpush1.msra.mxu0 0.0
    %616 = vmatprep.subr.mxu0 0.0
    %617 = vmatpush1.msra.mxu0 0.0
    %618 = vmatprep.subr.mxu0 0.0
    %619 = vmatpush1.msra.mxu0 0.0
    %620 = vmatprep.subr.mxu0 0.0
    %621 = vmatpush1.msra.mxu0 0.0
    %622 = vmatprep.subr.mxu0 0.0
    %623 = vmatpush1.msra.mxu0 0.0
    %624 = vmatprep.subr.mxu0 0.0
    %625 = vmatpush1.msra.mxu0 0.0
    %626 = vmatprep.mubr.f32.mxu0 0.0
    %v627 = vand.u32 %v529, 4294901760
    %v628 = vsub.f32 %v529, %v627
    %v629 = vand.u32 %v628, 4294901760
    %v630 = vsub.f32 %v628, %v629
    %v631 = vand.u32 %v630, 4294901760
    %632 = vmatmul.mubr.f32.gmra.mrb[0].mxu0 %v631
    %v633 = vpop.f32.mrb[0].mxu0
    %v634 = vadd.f32 0.0, %v633
    %v635 = vpop.f32.mrb[0].mxu0
    %636 = vdwg.mxu0
    %637 = vmatprep.subr.mxu0 0.0
    %v638 = vand.u32 %v530, 4294901760
    %v639 = vsub.f32 %v530, %v638
    %v640 = vand.u32 %v639, 4294901760
    %v641 = vsub.f32 %v639, %v640
    %v642 = vand.u32 %v641, 4294901760
    %643 = vmatpush1.msra.mxu0 %v642
    %644 = vmatprep.subr.mxu0 0.0
    %v645 = vand.u32 %v531, 4294901760
    %v646 = vsub.f32 %v531, %v645
    %v647 = vand.u32 %v646, 4294901760
    %v648 = vsub.f32 %v646, %v647
    %v649 = vand.u32 %v648, 4294901760
    %650 = vmatpush1.msra.mxu0 %v649
    %651 = vmatprep.subr.mxu0 0.0
    %v652 = vand.u32 %v532, 4294901760
    %v653 = vsub.f32 %v532, %v652
    %v654 = vand.u32 %v653, 4294901760
    %v655 = vsub.f32 %v653, %v654
    %v656 = vand.u32 %v655, 4294901760
    %657 = vmatpush1.msra.mxu0 %v656
    %658 = vmatprep.subr.mxu0 0.0
    %v659 = vand.u32 %v533, 4294901760
    %v660 = vsub.f32 %v533, %v659
    %v661 = vand.u32 %v660, 4294901760
    %v662 = vsub.f32 %v660, %v661
    %v663 = vand.u32 %v662, 4294901760
    %664 = vmatpush1.msra.mxu0 %v663
    %665 = vmatprep.subr.mxu0 0.0
    %v666 = vand.u32 %v534, 4294901760
    %v667 = vsub.f32 %v534, %v666
    %v668 = vand.u32 %v667, 4294901760
    %v669 = vsub.f32 %v667, %v668
    %v670 = vand.u32 %v669, 4294901760
    %671 = vmatpush1.msra.mxu0 %v670
    %672 = vmatprep.subr.mxu0 0.0
    %v673 = vand.u32 %v535, 4294901760
    %v674 = vsub.f32 %v535, %v673
    %v675 = vand.u32 %v674, 4294901760
    %v676 = vsub.f32 %v674, %v675
    %v677 = vand.u32 %v676, 4294901760
    %678 = vmatpush1.msra.mxu0 %v677
    %679 = vmatprep.subr.mxu0 0.0
    %v680 = vand.u32 %v536, 4294901760
    %v681 = vsub.f32 %v536, %v680
    %v682 = vand.u32 %v681, 4294901760
    %v683 = vsub.f32 %v681, %v682
    %v684 = vand.u32 %v683, 4294901760
    %685 = vmatpush1.msra.mxu0 %v684
    %686 = vmatprep.subr.mxu0 0.0
    %v687 = vand.u32 %v537, 4294901760
    %v688 = vsub.f32 %v537, %v687
    %v689 = vand.u32 %v688, 4294901760
    %v690 = vsub.f32 %v688, %v689
    %v691 = vand.u32 %v690, 4294901760
    %692 = vmatpush1.msra.mxu0 %v691
    %693 = vmatprep.subr.mxu0 0.0
    %v694 = vand.u32 %v538, 4294901760
    %v695 = vsub.f32 %v538, %v694
    %v696 = vand.u32 %v695, 4294901760
    %v697 = vsub.f32 %v695, %v696
    %v698 = vand.u32 %v697, 4294901760
    %699 = vmatpush1.msra.mxu0 %v698
    %700 = vmatprep.subr.mxu0 0.0
    %v701 = vand.u32 %v539, 4294901760
    %v702 = vsub.f32 %v539, %v701
    %v703 = vand.u32 %v702, 4294901760
    %v704 = vsub.f32 %v702, %v703
    %v705 = vand.u32 %v704, 4294901760
    %706 = vmatpush1.msra.mxu0 %v705
    %707 = vmatprep.subr.mxu0 0.0
    %v708 = vand.u32 %v540, 4294901760
    %v709 = vsub.f32 %v540, %v708
    %v710 = vand.u32 %v709, 4294901760
    %v711 = vsub.f32 %v709, %v710
    %v712 = vand.u32 %v711, 4294901760
    %713 = vmatpush1.msra.mxu0 %v712
    %714 = vmatprep.subr.mxu0 0.0
    %v715 = vand.u32 %v541, 4294901760
    %v716 = vsub.f32 %v541, %v715
    %v717 = vand.u32 %v716, 4294901760
    %v718 = vsub.f32 %v716, %v717
    %v719 = vand.u32 %v718, 4294901760
    %720 = vmatpush1.msra.mxu0 %v719
    %721 = vmatprep.subr.mxu0 0.0
    %v722 = vand.u32 %v542, 4294901760
    %v723 = vsub.f32 %v542, %v722
    %v724 = vand.u32 %v723, 4294901760
    %v725 = vsub.f32 %v723, %v724
    %v726 = vand.u32 %v725, 4294901760
    %727 = vmatpush1.msra.mxu0 %v726
    %728 = vmatprep.subr.mxu0 0.0
    %v729 = vand.u32 %v543, 4294901760
    %v730 = vsub.f32 %v543, %v729
    %v731 = vand.u32 %v730, 4294901760
    %v732 = vsub.f32 %v730, %v731
    %v733 = vand.u32 %v732, 4294901760
    %734 = vmatpush1.msra.mxu0 %v733
    %735 = vmatprep.subr.mxu0 0.0
    %v736 = vand.u32 %v544, 4294901760
    %v737 = vsub.f32 %v544, %v736
    %v738 = vand.u32 %v737, 4294901760
    %v739 = vsub.f32 %v737, %v738
    %v740 = vand.u32 %v739, 4294901760
    %741 = vmatpush1.msra.mxu0 %v740
    %742 = vmatprep.subr.mxu0 0.0
    %v743 = vand.u32 %v545, 4294901760
    %v744 = vsub.f32 %v545, %v743
    %v745 = vand.u32 %v744, 4294901760
    %v746 = vsub.f32 %v744, %v745
    %v747 = vand.u32 %v746, 4294901760
    %748 = vmatpush1.msra.mxu0 %v747
    %749 = vmatprep.subr.mxu0 0.0
    %750 = vmatpush1.msra.mxu0 0.0
    %751 = vmatprep.subr.mxu0 0.0
    %752 = vmatpush1.msra.mxu0 0.0
    %753 = vmatprep.subr.mxu0 0.0
    %754 = vmatpush1.msra.mxu0 0.0
    %755 = vmatprep.subr.mxu0 0.0
    %756 = vmatpush1.msra.mxu0 0.0
    %757 = vmatprep.subr.mxu0 0.0
    %758 = vmatpush1.msra.mxu0 0.0
    %759 = vmatprep.subr.mxu0 0.0
    %760 = vmatpush1.msra.mxu0 0.0
    %761 = vmatprep.subr.mxu0 0.0
    %762 = vmatpush1.msra.mxu0 0.0
    %763 = vmatprep.subr.mxu0 0.0
    %764 = vmatpush1.msra.mxu0 0.0
    %765 = vmatprep.subr.mxu0 0.0
    %766 = vmatpush1.msra.mxu0 0.0
    %767 = vmatprep.subr.mxu0 0.0
    %768 = vmatpush1.msra.mxu0 0.0
    %769 = vmatprep.subr.mxu0 0.0
    %770 = vmatpush1.msra.mxu0 0.0
    %771 = vmatprep.subr.mxu0 0.0
    %772 = vmatpush1.msra.mxu0 0.0
    %773 = vmatprep.subr.mxu0 0.0
    %774 = vmatpush1.msra.mxu0 0.0
    %775 = vmatprep.subr.mxu0 0.0
    %776 = vmatpush1.msra.mxu0 0.0
    %777 = vmatprep.subr.mxu0 0.0
    %778 = vmatpush1.msra.mxu0 0.0
    %779 = vmatprep.subr.mxu0 0.0
    %780 = vmatpush1.msra.mxu0 0.0
    %781 = vmatprep.mubr.f32.mxu0 0.0
    %v782 = vand.u32 %v529, 4294901760
    %783 = vmatmul.mubr.f32.gmra.mrb[0].mxu0 %v782
    %v784 = vpop.f32.mrb[0].mxu0
    %v785 = vadd.f32 %v634, %v784
    %v786 = vpop.f32.mrb[0].mxu0
    %787 = vdwg.mxu0
    %788 = vmatprep.subr.mxu0 0.0
    %v789 = vand.u32 %v530, 4294901760
    %v790 = vsub.f32 %v530, %v789
    %791 = vmatpush1.msra.mxu0 %v790
    %792 = vmatprep.subr.mxu0 0.0
    %v793 = vand.u32 %v531, 4294901760
    %v794 = vsub.f32 %v531, %v793
    %795 = vmatpush1.msra.mxu0 %v794
    %796 = vmatprep.subr.mxu0 0.0
    %v797 = vand.u32 %v532, 4294901760
    %v798 = vsub.f32 %v532, %v797
    %799 = vmatpush1.msra.mxu0 %v798
    %800 = vmatprep.subr.mxu0 0.0
    %v801 = vand.u32 %v533, 4294901760
    %v802 = vsub.f32 %v533, %v801
    %803 = vmatpush1.msra.mxu0 %v802
    %804 = vmatprep.subr.mxu0 0.0
    %v805 = vand.u32 %v534, 4294901760
    %v806 = vsub.f32 %v534, %v805
    %807 = vmatpush1.msra.mxu0 %v806
    %808 = vmatprep.subr.mxu0 0.0
    %v809 = vand.u32 %v535, 4294901760
    %v810 = vsub.f32 %v535, %v809
    %811 = vmatpush1.msra.mxu0 %v810
    %812 = vmatprep.subr.mxu0 0.0
    %v813 = vand.u32 %v536, 4294901760
    %v814 = vsub.f32 %v536, %v813
    %815 = vmatpush1.msra.mxu0 %v814
    %816 = vmatprep.subr.mxu0 0.0
    %v817 = vand.u32 %v537, 4294901760
    %v818 = vsub.f32 %v537, %v817
    %819 = vmatpush1.msra.mxu0 %v818
    %820 = vmatprep.subr.mxu0 0.0
    %v821 = vand.u32 %v538, 4294901760
    %v822 = vsub.f32 %v538, %v821
    %823 = vmatpush1.msra.mxu0 %v822
    %824 = vmatprep.subr.mxu0 0.0
    %v825 = vand.u32 %v539, 4294901760
    %v826 = vsub.f32 %v539, %v825
    %827 = vmatpush1.msra.mxu0 %v826
    %828 = vmatprep.subr.mxu0 0.0
    %v829 = vand.u32 %v540, 4294901760
    %v830 = vsub.f32 %v540, %v829
    %831 = vmatpush1.msra.mxu0 %v830
    %832 = vmatprep.subr.mxu0 0.0
    %v833 = vand.u32 %v541, 4294901760
    %v834 = vsub.f32 %v541, %v833
    %835 = vmatpush1.msra.mxu0 %v834
    %836 = vmatprep.subr.mxu0 0.0
    %v837 = vand.u32 %v542, 4294901760
    %v838 = vsub.f32 %v542, %v837
    %839 = vmatpush1.msra.mxu0 %v838
    %840 = vmatprep.subr.mxu0 0.0
    %v841 = vand.u32 %v543, 4294901760
    %v842 = vsub.f32 %v543, %v841
    %843 = vmatpush1.msra.mxu0 %v842
    %844 = vmatprep.subr.mxu0 0.0
    %v845 = vand.u32 %v544, 4294901760
    %v846 = vsub.f32 %v544, %v845
    %847 = vmatpush1.msra.mxu0 %v846
    %848 = vmatprep.subr.mxu0 0.0
    %v849 = vand.u32 %v545, 4294901760
    %v850 = vsub.f32 %v545, %v849
    %851 = vmatpush1.msra.mxu0 %v850
    %852 = vmatprep.subr.mxu0 0.0
    %853 = vmatpush1.msra.mxu0 0.0
    %854 = vmatprep.subr.mxu0 0.0
    %855 = vmatpush1.msra.mxu0 0.0
    %856 = vmatprep.subr.mxu0 0.0
    %857 = vmatpush1.msra.mxu0 0.0
    %858 = vmatprep.subr.mxu0 0.0
    %859 = vmatpush1.msra.mxu0 0.0
    %860 = vmatprep.subr.mxu0 0.0
    %861 = vmatpush1.msra.mxu0 0.0
    %862 = vmatprep.subr.mxu0 0.0
    %863 = vmatpush1.msra.mxu0 0.0
    %864 = vmatprep.subr.mxu0 0.0
    %865 = vmatpush1.msra.mxu0 0.0
    %866 = vmatprep.subr.mxu0 0.0
    %867 = vmatpush1.msra.mxu0 0.0
    %868 = vmatprep.subr.mxu0 0.0
    %869 = vmatpush1.msra.mxu0 0.0
    %870 = vmatprep.subr.mxu0 0.0
    %871 = vmatpush1.msra.mxu0 0.0
    %872 = vmatprep.subr.mxu0 0.0
    %873 = vmatpush1.msra.mxu0 0.0
    %874 = vmatprep.subr.mxu0 0.0
    %875 = vmatpush1.msra.mxu0 0.0
    %876 = vmatprep.subr.mxu0 0.0
    %877 = vmatpush1.msra.mxu0 0.0
    %878 = vmatprep.subr.mxu0 0.0
    %879 = vmatpush1.msra.mxu0 0.0
    %880 = vmatprep.subr.mxu0 0.0
    %881 = vmatpush1.msra.mxu0 0.0
    %882 = vmatprep.subr.mxu0 0.0
    %883 = vmatpush1.msra.mxu0 0.0
    %884 = vmatprep.mubr.f32.mxu0 0.0
    %v885 = vand.u32 %v529, 4294901760
    %v886 = vsub.f32 %v529, %v885
    %887 = vmatmul.mubr.f32.gmra.mrb[0].mxu0 %v886
    %v888 = vpop.f32.mrb[0].mxu0
    %v889 = vadd.f32 %v785, %v888
    %v890 = vpop.f32.mrb[0].mxu0
    %891 = vdwg.mxu0
    %892 = vmatprep.subr.mxu0 0.0
    %v893 = vand.u32 %v530, 4294901760
    %894 = vmatpush1.msra.mxu0 %v893
    %895 = vmatprep.subr.mxu0 0.0
    %v896 = vand.u32 %v531, 4294901760
    %897 = vmatpush1.msra.mxu0 %v896
    %898 = vmatprep.subr.mxu0 0.0
    %v899 = vand.u32 %v532, 4294901760
    %900 = vmatpush1.msra.mxu0 %v899
    %901 = vmatprep.subr.mxu0 0.0
    %v902 = vand.u32 %v533, 4294901760
    %903 = vmatpush1.msra.mxu0 %v902
    %904 = vmatprep.subr.mxu0 0.0
    %v905 = vand.u32 %v534, 4294901760
    %906 = vmatpush1.msra.mxu0 %v905
    %907 = vmatprep.subr.mxu0 0.0
    %v908 = vand.u32 %v535, 4294901760
    %909 = vmatpush1.msra.mxu0 %v908
    %910 = vmatprep.subr.mxu0 0.0
    %v911 = vand.u32 %v536, 4294901760
    %912 = vmatpush1.msra.mxu0 %v911
    %913 = vmatprep.subr.mxu0 0.0
    %v914 = vand.u32 %v537, 4294901760
    %915 = vmatpush1.msra.mxu0 %v914
    %916 = vmatprep.subr.mxu0 0.0
    %v917 = vand.u32 %v538, 4294901760
    %918 = vmatpush1.msra.mxu0 %v917
    %919 = vmatprep.subr.mxu0 0.0
    %v920 = vand.u32 %v539, 4294901760
    %921 = vmatpush1.msra.mxu0 %v920
    %922 = vmatprep.subr.mxu0 0.0
    %v923 = vand.u32 %v540, 4294901760
    %924 = vmatpush1.msra.mxu0 %v923
    %925 = vmatprep.subr.mxu0 0.0
    %v926 = vand.u32 %v541, 4294901760
    %927 = vmatpush1.msra.mxu0 %v926
    %928 = vmatprep.subr.mxu0 0.0
    %v929 = vand.u32 %v542, 4294901760
    %930 = vmatpush1.msra.mxu0 %v929
    %931 = vmatprep.subr.mxu0 0.0
    %v932 = vand.u32 %v543, 4294901760
    %933 = vmatpush1.msra.mxu0 %v932
    %934 = vmatprep.subr.mxu0 0.0
    %v935 = vand.u32 %v544, 4294901760
    %936 = vmatpush1.msra.mxu0 %v935
    %937 = vmatprep.subr.mxu0 0.0
    %v938 = vand.u32 %v545, 4294901760
    %939 = vmatpush1.msra.mxu0 %v938
    %940 = vmatprep.subr.mxu0 0.0
    %941 = vmatpush1.msra.mxu0 0.0
    %942 = vmatprep.subr.mxu0 0.0
    %943 = vmatpush1.msra.mxu0 0.0
    %944 = vmatprep.subr.mxu0 0.0
    %945 = vmatpush1.msra.mxu0 0.0
    %946 = vmatprep.subr.mxu0 0.0
    %947 = vmatpush1.msra.mxu0 0.0
    %948 = vmatprep.subr.mxu0 0.0
    %949 = vmatpush1.msra.mxu0 0.0
    %950 = vmatprep.subr.mxu0 0.0
    %951 = vmatpush1.msra.mxu0 0.0
    %952 = vmatprep.subr.mxu0 0.0
    %953 = vmatpush1.msra.mxu0 0.0
    %954 = vmatprep.subr.mxu0 0.0
    %955 = vmatpush1.msra.mxu0 0.0
    %956 = vmatprep.subr.mxu0 0.0
    %957 = vmatpush1.msra.mxu0 0.0
    %958 = vmatprep.subr.mxu0 0.0
    %959 = vmatpush1.msra.mxu0 0.0
    %960 = vmatprep.subr.mxu0 0.0
    %961 = vmatpush1.msra.mxu0 0.0
    %962 = vmatprep.subr.mxu0 0.0
    %963 = vmatpush1.msra.mxu0 0.0
    %964 = vmatprep.subr.mxu0 0.0
    %965 = vmatpush1.msra.mxu0 0.0
    %966 = vmatprep.subr.mxu0 0.0
    %967 = vmatpush1.msra.mxu0 0.0
    %968 = vmatprep.subr.mxu0 0.0
    %969 = vmatpush1.msra.mxu0 0.0
    %970 = vmatprep.subr.mxu0 0.0
    %971 = vmatpush1.msra.mxu0 0.0
    %972 = vmatprep.mubr.f32.mxu0 0.0
    %v973 = vand.u32 %v529, 4294901760
    %v974 = vsub.f32 %v529, %v973
    %v975 = vand.u32 %v974, 4294901760
    %976 = vmatmul.mubr.f32.gmra.mrb[0].mxu0 %v975
    %v977 = vpop.f32.mrb[0].mxu0
    %v978 = vadd.f32 %v889, %v977
    %v979 = vpop.f32.mrb[0].mxu0
    %980 = vdwg.mxu0
    %981 = vmatprep.subr.mxu0 0.0
    %v982 = vand.u32 %v530, 4294901760
    %v983 = vsub.f32 %v530, %v982
    %v984 = vand.u32 %v983, 4294901760
    %985 = vmatpush1.msra.mxu0 %v984
    %986 = vmatprep.subr.mxu0 0.0
    %v987 = vand.u32 %v531, 4294901760
    %v988 = vsub.f32 %v531, %v987
    %v989 = vand.u32 %v988, 4294901760
    %990 = vmatpush1.msra.mxu0 %v989
    %991 = vmatprep.subr.mxu0 0.0
    %v992 = vand.u32 %v532, 4294901760
    %v993 = vsub.f32 %v532, %v992
    %v994 = vand.u32 %v993, 4294901760
    %995 = vmatpush1.msra.mxu0 %v994
    %996 = vmatprep.subr.mxu0 0.0
    %v997 = vand.u32 %v533, 4294901760
    %v998 = vsub.f32 %v533, %v997
    %v999 = vand.u32 %v998, 4294901760
    %1000 = vmatpush1.msra.mxu0 %v999
    %1001 = vmatprep.subr.mxu0 0.0
    %v1002 = vand.u32 %v534, 4294901760
    %v1003 = vsub.f32 %v534, %v1002
    %v1004 = vand.u32 %v1003, 4294901760
    %1005 = vmatpush1.msra.mxu0 %v1004
    %1006 = vmatprep.subr.mxu0 0.0
    %v1007 = vand.u32 %v535, 4294901760
    %v1008 = vsub.f32 %v535, %v1007
    %v1009 = vand.u32 %v1008, 4294901760
    %1010 = vmatpush1.msra.mxu0 %v1009
    %1011 = vmatprep.subr.mxu0 0.0
    %v1012 = vand.u32 %v536, 4294901760
    %v1013 = vsub.f32 %v536, %v1012
    %v1014 = vand.u32 %v1013, 4294901760
    %1015 = vmatpush1.msra.mxu0 %v1014
    %1016 = vmatprep.subr.mxu0 0.0
    %v1017 = vand.u32 %v537, 4294901760
    %v1018 = vsub.f32 %v537, %v1017
    %v1019 = vand.u32 %v1018, 4294901760
    %1020 = vmatpush1.msra.mxu0 %v1019
    %1021 = vmatprep.subr.mxu0 0.0
    %v1022 = vand.u32 %v538, 4294901760
    %v1023 = vsub.f32 %v538, %v1022
    %v1024 = vand.u32 %v1023, 4294901760
    %1025 = vmatpush1.msra.mxu0 %v1024
    %1026 = vmatprep.subr.mxu0 0.0
    %v1027 = vand.u32 %v539, 4294901760
    %v1028 = vsub.f32 %v539, %v1027
    %v1029 = vand.u32 %v1028, 4294901760
    %1030 = vmatpush1.msra.mxu0 %v1029
    %1031 = vmatprep.subr.mxu0 0.0
    %v1032 = vand.u32 %v540, 4294901760
    %v1033 = vsub.f32 %v540, %v1032
    %v1034 = vand.u32 %v1033, 4294901760
    %1035 = vmatpush1.msra.mxu0 %v1034
    %1036 = vmatprep.subr.mxu0 0.0
    %v1037 = vand.u32 %v541, 4294901760
    %v1038 = vsub.f32 %v541, %v1037
    %v1039 = vand.u32 %v1038, 4294901760
    %1040 = vmatpush1.msra.mxu0 %v1039
    %1041 = vmatprep.subr.mxu0 0.0
    %v1042 = vand.u32 %v542, 4294901760
    %v1043 = vsub.f32 %v542, %v1042
    %v1044 = vand.u32 %v1043, 4294901760
    %1045 = vmatpush1.msra.mxu0 %v1044
    %1046 = vmatprep.subr.mxu0 0.0
    %v1047 = vand.u32 %v543, 4294901760
    %v1048 = vsub.f32 %v543, %v1047
    %v1049 = vand.u32 %v1048, 4294901760
    %1050 = vmatpush1.msra.mxu0 %v1049
    %1051 = vmatprep.subr.mxu0 0.0
    %v1052 = vand.u32 %v544, 4294901760
    %v1053 = vsub.f32 %v544, %v1052
    %v1054 = vand.u32 %v1053, 4294901760
    %1055 = vmatpush1.msra.mxu0 %v1054
    %1056 = vmatprep.subr.mxu0 0.0
    %v1057 = vand.u32 %v545, 4294901760
    %v1058 = vsub.f32 %v545, %v1057
    %v1059 = vand.u32 %v1058, 4294901760
    %1060 = vmatpush1.msra.mxu0 %v1059
    %1061 = vmatprep.subr.mxu0 0.0
    %1062 = vmatpush1.msra.mxu0 0.0
    %1063 = vmatprep.subr.mxu0 0.0
    %1064 = vmatpush1.msra.mxu0 0.0
    %1065 = vmatprep.subr.mxu0 0.0
    %1066 = vmatpush1.msra.mxu0 0.0
    %1067 = vmatprep.subr.mxu0 0.0
    %1068 = vmatpush1.msra.mxu0 0.0
    %1069 = vmatprep.subr.mxu0 0.0
    %1070 = vmatpush1.msra.mxu0 0.0
    %1071 = vmatprep.subr.mxu0 0.0
    %1072 = vmatpush1.msra.mxu0 0.0
    %1073 = vmatprep.subr.mxu0 0.0
    %1074 = vmatpush1.msra.mxu0 0.0
    %1075 = vmatprep.subr.mxu0 0.0
    %1076 = vmatpush1.msra.mxu0 0.0
    %1077 = vmatprep.subr.mxu0 0.0
    %1078 = vmatpush1.msra.mxu0 0.0
    %1079 = vmatprep.subr.mxu0 0.0
    %1080 = vmatpush1.msra.mxu0 0.0
    %1081 = vmatprep.subr.mxu0 0.0
    %1082 = vmatpush1.msra.mxu0 0.0
    %1083 = vmatprep.subr.mxu0 0.0
    %1084 = vmatpush1.msra.mxu0 0.0
    %1085 = vmatprep.subr.mxu0 0.0
    %1086 = vmatpush1.msra.mxu0 0.0
    %1087 = vmatprep.subr.mxu0 0.0
    %1088 = vmatpush1.msra.mxu0 0.0
    %1089 = vmatprep.subr.mxu0 0.0
    %1090 = vmatpush1.msra.mxu0 0.0
    %1091 = vmatprep.subr.mxu0 0.0
    %1092 = vmatpush1.msra.mxu0 0.0
    %1093 = vmatprep.mubr.f32.mxu0 0.0
    %v1094 = vand.u32 %v529, 4294901760
    %1095 = vmatmul.mubr.f32.gmra.mrb[0].mxu0 %v1094
    %v1096 = vpop.f32.mrb[0].mxu0
    %v1097 = vadd.f32 %v978, %v1096
    %v1098 = vpop.f32.mrb[0].mxu0
    %1099 = vdwg.mxu0
    %1100 = vmatprep.subr.mxu0 0.0
    %v1101 = vand.u32 %v530, 4294901760
    %1102 = vmatpush1.msra.mxu0 %v1101
    %1103 = vmatprep.subr.mxu0 0.0
    %v1104 = vand.u32 %v531, 4294901760
    %1105 = vmatpush1.msra.mxu0 %v1104
    %1106 = vmatprep.subr.mxu0 0.0
    %v1107 = vand.u32 %v532, 4294901760
    %1108 = vmatpush1.msra.mxu0 %v1107
    %1109 = vmatprep.subr.mxu0 0.0
    %v1110 = vand.u32 %v533, 4294901760
    %1111 = vmatpush1.msra.mxu0 %v1110
    %1112 = vmatprep.subr.mxu0 0.0
    %v1113 = vand.u32 %v534, 4294901760
    %1114 = vmatpush1.msra.mxu0 %v1113
    %1115 = vmatprep.subr.mxu0 0.0
    %v1116 = vand.u32 %v535, 4294901760
    %1117 = vmatpush1.msra.mxu0 %v1116
    %1118 = vmatprep.subr.mxu0 0.0
    %v1119 = vand.u32 %v536, 4294901760
    %1120 = vmatpush1.msra.mxu0 %v1119
    %1121 = vmatprep.subr.mxu0 0.0
    %v1122 = vand.u32 %v537, 4294901760
    %1123 = vmatpush1.msra.mxu0 %v1122
    %1124 = vmatprep.subr.mxu0 0.0
    %v1125 = vand.u32 %v538, 4294901760
    %1126 = vmatpush1.msra.mxu0 %v1125
    %1127 = vmatprep.subr.mxu0 0.0
    %v1128 = vand.u32 %v539, 4294901760
    %1129 = vmatpush1.msra.mxu0 %v1128
    %1130 = vmatprep.subr.mxu0 0.0
    %v1131 = vand.u32 %v540, 4294901760
    %1132 = vmatpush1.msra.mxu0 %v1131
    %1133 = vmatprep.subr.mxu0 0.0
    %v1134 = vand.u32 %v541, 4294901760
    %1135 = vmatpush1.msra.mxu0 %v1134
    %1136 = vmatprep.subr.mxu0 0.0
    %v1137 = vand.u32 %v542, 4294901760
    %1138 = vmatpush1.msra.mxu0 %v1137
    %1139 = vmatprep.subr.mxu0 0.0
    %v1140 = vand.u32 %v543, 4294901760
    %1141 = vmatpush1.msra.mxu0 %v1140
    %1142 = vmatprep.subr.mxu0 0.0
    %v1143 = vand.u32 %v544, 4294901760
    %1144 = vmatpush1.msra.mxu0 %v1143
    %1145 = vmatprep.subr.mxu0 0.0
    %v1146 = vand.u32 %v545, 4294901760
    %1147 = vmatpush1.msra.mxu0 %v1146
    %1148 = vmatprep.subr.mxu0 0.0
    %1149 = vmatpush1.msra.mxu0 0.0
    %1150 = vmatprep.subr.mxu0 0.0
    %1151 = vmatpush1.msra.mxu0 0.0
    %1152 = vmatprep.subr.mxu0 0.0
    %1153 = vmatpush1.msra.mxu0 0.0
    %1154 = vmatprep.subr.mxu0 0.0
    %1155 = vmatpush1.msra.mxu0 0.0
    %1156 = vmatprep.subr.mxu0 0.0
    %1157 = vmatpush1.msra.mxu0 0.0
    %1158 = vmatprep.subr.mxu0 0.0
    %1159 = vmatpush1.msra.mxu0 0.0
    %1160 = vmatprep.subr.mxu0 0.0
    %1161 = vmatpush1.msra.mxu0 0.0
    %1162 = vmatprep.subr.mxu0 0.0
    %1163 = vmatpush1.msra.mxu0 0.0
    %1164 = vmatprep.subr.mxu0 0.0
    %1165 = vmatpush1.msra.mxu0 0.0
    %1166 = vmatprep.subr.mxu0 0.0
    %1167 = vmatpush1.msra.mxu0 0.0
    %1168 = vmatprep.subr.mxu0 0.0
    %1169 = vmatpush1.msra.mxu0 0.0
    %1170 = vmatprep.subr.mxu0 0.0
    %1171 = vmatpush1.msra.mxu0 0.0
    %1172 = vmatprep.subr.mxu0 0.0
    %1173 = vmatpush1.msra.mxu0 0.0
    %1174 = vmatprep.subr.mxu0 0.0
    %1175 = vmatpush1.msra.mxu0 0.0
    %1176 = vmatprep.subr.mxu0 0.0
    %1177 = vmatpush1.msra.mxu0 0.0
    %1178 = vmatprep.subr.mxu0 0.0
    %1179 = vmatpush1.msra.mxu0 0.0
    %1180 = vmatprep.mubr.f32.mxu0 0.0
    %v1181 = vand.u32 %v529, 4294901760
    %1182 = vmatmul.mubr.f32.gmra.mrb[0].mxu0 %v1181
    %v1183 = vpop.f32.mrb[0].mxu0
    %v1184 = vadd.f32 %v1097, %v1183
    %v1185 = vpop.f32.mrb[0].mxu0
    %1186 = vdwg.mxu0
    %v1187 = vrot.slane %v1184, 4
    %v1188 = vadd.f32 %v1184, %v1187
    %v1189 = vrot.slane %v1188, 2
    %v1190 = vadd.f32 %v1188, %v1189
    %v1191 = vrot.slane %v1190, 1
    %v1192 = vadd.f32 %v1190, %v1191
    %v1193 = vmul.f32 %v1192, %v510
    %v1194 = vmul.f32 %v1184, %v1184
    %v1195 = vrot.slane %v1194, 4
    %v1196 = vadd.f32 %v1194, %v1195
    %v1197 = vrot.slane %v1196, 2
    %v1198 = vadd.f32 %v1196, %v1197
    %v1199 = vrot.slane %v1198, 1
    %v1200 = vadd.f32 %v1198, %v1199
    %v1201 = vmul.f32 %v1200, %v510
    %v1202 = vmul.f32 %v1193, %v1193
    %v1203 = vsub.f32 %v1201, %v1202
    %v1204 = vmax.f32 %v1203, 0.0
    %v1205 = vsub.f32 %v1184, %v1193
    %v1206 = vadd.f32 %v1204, 1e-05
    %v1207 = vrsqrt.pop %v1206
    %v1208 = vmul.f32 %v1205, %v1207
    %v1209 = vmax.f32 %v1208, 0.0
    %v1210 = vld [vmem:[%s4] sm:$0x1]
    %v1212 = vlaneseq
    %v1213 = vshrl.u32 %v1212, 7
    %v1214 = vsub.s32 0, %v1213
    %v1215 = vrot.slane %v1210, %v1214
    %v1217 = vmul.f32 %v1209, %v1215
    %1218 = vadd.xlane.f32.xlu0 %v1217
    %v1219 = vpop.xlane.xlu0 %1218
    %s1220 = sld [smem:[#allocation2]]
    %v1221 = vstv %s1220
    %v1222 = vadd.f32 %v1219, %v1221
    %vm1223 = vcmask 7168
    %1224 = vst.msk [vmem:[%s6] sm:$0xff] %vm1223, %v1222
    // Predicated region
    $region30: #{forward.1} parent=1 // pred_check
      _
    $region31: #{forward.1} parent=1 // pred_check_branch
      %1226 = sbr.rel (0) target = $region33
    $region32: #{forward.1} parent=1 // pred_region
      _
    $region33: #{forward.1} parent=1 // pred_fallthru
      _
    // Predicated region
    $region34: #{forward.1} parent=1 // pred_check
      _
    $region35: #{forward.1} parent=1 // pred_check_branch
      %1228 = sbr.rel (0) target = $region37
    $region36: #{forward.1} parent=1 // pred_region
      _
    $region37: #{forward.1} parent=1 // pred_fallthru
      _
    %1229 = vsyncpa [#allocation4], 1

</llo_original>
